<compile_context>
chip_gen: v5e
topology: v5e:2x2
jax: 0.10.0
libtpu: 0.0.40
codegen_flags: <defaults>
</compile_context>

<pallas_src>
import jax
import jax.numpy as jnp
from jax.experimental import pallas as pl
from jax.experimental.pallas import tpu as pltpu

LANES = 128
X5_PAD = 8  # x5 is padded to 8 output lanes (real width = 2)


def _round_up(n, m):
    return (n + m - 1) // m * m


def _cdiv(a, b):
    return (a + b - 1) // b


def mlp_kernel(x_ref,
               w1_ref, b1_ref,
               w2_ref, b2_ref,
               w3a_ref, b3a_ref,
               w3b_ref, b3b_ref,
               w4_ref, b4_ref,
               w5_ref, b5_ref,
               slab_out, x5_out):
    x = x_ref[...]

    # fc1: 256 -> 128 (already lane-dense)
    x1 = jnp.dot(x, w1_ref[...], preferred_element_type=jnp.float32) + b1_ref[...]
    h1 = jnp.maximum(x1, 0.0)

    # fc2..fc4 use zero-padded [*,128] weights so every vreg stays full;
    # padded columns are exactly 0 through bias + ReLU, so results are exact.
    x2 = jnp.dot(h1, w2_ref[...], preferred_element_type=jnp.float32) + b2_ref[...]
    h2 = jnp.maximum(x2, 0.0)

    t = jnp.maximum(
        jnp.dot(h2, w3a_ref[...], preferred_element_type=jnp.float32) + b3a_ref[...],
        0.0)
    x3 = jnp.dot(t, w3b_ref[...], preferred_element_type=jnp.float32) + b3b_ref[...]
    h3 = jnp.maximum(x3, 0.0)

    x4 = jnp.dot(h3, w4_ref[...], preferred_element_type=jnp.float32) + b4_ref[...]
    h4 = jnp.maximum(x4, 0.0)

    # fc5: only 8 padded output lanes (real width 2) -> narrow dedicated output.
    x5 = jnp.dot(h4, w5_ref[...], preferred_element_type=jnp.float32) + b5_ref[...]

    # Single lane-dense 256-wide slab assembled in registers, one dense store:
    #   [ x1(0:128) | x2(128:192) | x3(192:224) | x4(224:240) | h4(240:256) ]
    slab_out[...] = jnp.concatenate(
        [x1, x2[:, :64], x3[:, :32], x4[:, :16], h4[:, :16]], axis=-1)
    x5_out[...] = x5
    # (relu5 is applied in torch but its result is never returned)


def _pad_to(w, rows, cols):
    return jnp.pad(w, ((0, rows - w.shape[0]), (0, cols - w.shape[1])))


def pad_params(p):
    """Zero-pad tiny weight matrices / biases (done once, outside the kernel)."""
    q = {"w1": p["w1"], "b1": p["b1"]}  # fc1 is already (256,128)/(1,128)
    for name in ("2", "3a", "3b", "4"):
        q[f"w{name}"] = _pad_to(p[f"w{name}"], LANES, LANES)
        q[f"b{name}"] = _pad_to(p[f"b{name}"], 1, LANES)
    # fc5: pad output lanes only to 8 (not 128) -> no wasted writeback bytes.
    q["w5"] = _pad_to(p["w5"], LANES, X5_PAD)
    q["b5"] = _pad_to(p["b5"], 1, X5_PAD)
    return q


def _choose_tiling(B, tile_b_max=1024):
    """8-aligned batch tile minimizing padding; >=2 tiles for megacore when B is non-trivial."""
    tile_b_max = max(8, min(_round_up(tile_b_max, 8), _round_up(B, 8)))
    if B >= 64:
        # Ensure at least 2 grid tiles so the "parallel" axis shards across
        # both v7x TensorCores (harmless on single-TC v5e/v6e).
        tile_b_max = min(tile_b_max, _round_up(_cdiv(B, 2), 8))
    num_tiles = _cdiv(B, tile_b_max)
    tile_b = _round_up(_cdiv(B, num_tiles), 8)   # always a multiple of 8
    Bp = num_tiles * tile_b                      # overshoot <= 7 rows per tile
    return tile_b, num_tiles, Bp


def test_forward(x, padded_params, *, tile_b_max=1024):
    """x: [B, 256] f32; padded_params: output of pad_params()."""
    B = x.shape[0]
    tile_b, num_tiles, Bp = _choose_tiling(B, tile_b_max)
    if Bp != B:
        x = jnp.pad(x, ((0, Bp - B), (0, 0)))

    p = padded_params
    weight_args = (p["w1"], p["b1"], p["w2"], p["b2"], p["w3a"], p["b3a"],
                   p["w3b"], p["b3b"], p["w4"], p["b4"], p["w5"], p["b5"])

    # Weights/biases: full-array blocks with a constant index_map -> resident
    # in VMEM across the whole batch grid (no re-DMA per step).
    def resident(arr):
        return pl.BlockSpec(arr.shape, lambda i: (0, 0))

    in_specs = ([pl.BlockSpec((tile_b, 256), lambda i: (i, 0))] +
                [resident(a) for a in weight_args])

    out_shapes = (
        jax.ShapeDtypeStruct((Bp, 256), jnp.float32),     # coalesced slab
        jax.ShapeDtypeStruct((Bp, X5_PAD), jnp.float32),  # x5 (padded to 8)
    )
    out_specs = (
        pl.BlockSpec((tile_b, 256), lambda i: (i, 0)),
        pl.BlockSpec((tile_b, X5_PAD), lambda i: (i, 0)),
    )

    flops = 2 * Bp * (256 * 128 + 128 * 64 + 64 * 32 + 32 * 32 + 32 * 16 + 16 * 2)
    bytes_accessed = (Bp * 256 * 4                       # x in
                      + Bp * (256 + X5_PAD) * 4          # outputs
                      + sum(a.size * 4 for a in weight_args))
    cost = pl.CostEstimate(flops=flops, transcendentals=0,
                           bytes_accessed=bytes_accessed)

    slab, x5p = pl.pallas_call(
        mlp_kernel,
        out_shape=out_shapes,
        grid=(num_tiles,),
        in_specs=in_specs,
        out_specs=out_specs,
        compiler_params=pltpu.CompilerParams(
            dimension_semantics=("parallel",)),
        cost_estimate=cost,
    )(x, *weight_args)

    slab = slab[:B]
    x1      = slab[:, 0:128]
    x2      = slab[:, 128:192]
    x3      = slab[:, 192:224]
    x4      = slab[:, 224:240]
    x4_relu = slab[:, 240:256]
    x5      = x5p[:B, :2]
    return x1, x2, x3, x4, x5, x4_relu


def init_params(key):
    """Deterministic init mimicking nn.Linear's uniform(-1/sqrt(fan_in), ...)."""
    dims = [("1", 256, 128), ("2", 128, 64), ("3a", 64, 32),
            ("3b", 32, 32), ("4", 32, 16), ("5", 16, 2)]
    params = {}
    for name, fan_in, fan_out in dims:
        key, kw, kb = jax.random.split(key, 3)
        bound = 1.0 / (fan_in ** 0.5)
        params[f"w{name}"] = jax.random.uniform(
            kw, (fan_in, fan_out), jnp.float32, -bound, bound)  # stored [in, out]
        params[f"b{name}"] = jax.random.uniform(
            kb, (1, fan_out), jnp.float32, -bound, bound)
    return params


def reference_forward(x, p):
    """Pure-JAX reference matching the torch module semantics."""
    x1 = x @ p["w1"] + p["b1"]
    h1 = jnp.maximum(x1, 0.0)
    x2 = h1 @ p["w2"] + p["b2"]
    h2 = jnp.maximum(x2, 0.0)
    t = jnp.maximum(h2 @ p["w3a"] + p["b3a"], 0.0)
    x3 = t @ p["w3b"] + p["b3b"]
    h3 = jnp.maximum(x3, 0.0)
    x4 = h3 @ p["w4"] + p["b4"]
    h4 = jnp.maximum(x4, 0.0)
    x5 = h4 @ p["w5"] + p["b5"]
    return x1, x2, x3, x4, x5, h4


if __name__ == "__main__":
    key = jax.random.PRNGKey(0)
    key, kx = jax.random.split(key)
    params = init_params(key)
    padded = pad_params(params)

    # Small smoke test (matches the module's natural tiny-batch use).
    B = 8
    x = jax.random.normal(kx, (B, 256), jnp.float32)
    outs = jax.block_until_ready(test_forward(x, padded))
    refs = reference_forward(x, params)
    for o, r in zip(outs, refs):
        assert o.shape == r.shape and o.dtype == r.dtype
        assert jnp.allclose(o, r, atol=1e-4, rtol=1e-4)

    # Larger, non-multiple batch: exercises the padding-minimizing tiling
    # (B=600 -> 2 tiles of 304 rows, ~1% padding) and the 2-tile megacore path.
    key, kx2 = jax.random.split(key)
    B2 = 600
    x2 = jax.random.normal(kx2, (B2, 256), jnp.float32)
    outs2 = jax.block_until_ready(test_forward(x2, padded))
    refs2 = reference_forward(x2, params)
    for o, r in zip(outs2, refs2):
        assert o.shape == r.shape and o.dtype == r.dtype
        assert jnp.allclose(o, r, atol=1e-4, rtol=1e-4)

    print("KERNEL_OK")
</pallas_src>

<mosaic_0001>
module attributes {stable_mosaic.version = 11 : i64} {
  func.func @mlp_kernel(%arg0: i32, %arg1: memref<8x256xf32, #tpu.memory_space<vmem>>, %arg2: memref<256x128xf32, #tpu.memory_space<vmem>>, %arg3: memref<1x128xf32, #tpu.memory_space<vmem>>, %arg4: memref<128x128xf32, #tpu.memory_space<vmem>>, %arg5: memref<1x128xf32, #tpu.memory_space<vmem>>, %arg6: memref<128x128xf32, #tpu.memory_space<vmem>>, %arg7: memref<1x128xf32, #tpu.memory_space<vmem>>, %arg8: memref<128x128xf32, #tpu.memory_space<vmem>>, %arg9: memref<1x128xf32, #tpu.memory_space<vmem>>, %arg10: memref<128x128xf32, #tpu.memory_space<vmem>>, %arg11: memref<1x128xf32, #tpu.memory_space<vmem>>, %arg12: memref<128x8xf32, #tpu.memory_space<vmem>>, %arg13: memref<1x8xf32, #tpu.memory_space<vmem>>, %arg14: memref<8x256xf32, #tpu.memory_space<vmem>>, %arg15: memref<8x8xf32, #tpu.memory_space<vmem>>) attributes {dimension_semantics = [#tpu.dimension_semantics<parallel>], iteration_bounds = array<i64: 1>, scalar_prefetch = 0 : i64, scratch_operands = 0 : i64, tpu.core_type = #tpu.core_type<tc>, window_params = [{transform_indices = @transform_0, window_bounds = array<i64: 8, 256>}, {pipeline_mode = #tpu.pipeline_mode<synchronous>, transform_indices = @transform_1, window_bounds = array<i64: 256, 128>}, {pipeline_mode = #tpu.pipeline_mode<synchronous>, transform_indices = @transform_2, window_bounds = array<i64: 1, 128>}, {pipeline_mode = #tpu.pipeline_mode<synchronous>, transform_indices = @transform_3, window_bounds = array<i64: 128, 128>}, {pipeline_mode = #tpu.pipeline_mode<synchronous>, transform_indices = @transform_4, window_bounds = array<i64: 1, 128>}, {pipeline_mode = #tpu.pipeline_mode<synchronous>, transform_indices = @transform_5, window_bounds = array<i64: 128, 128>}, {pipeline_mode = #tpu.pipeline_mode<synchronous>, transform_indices = @transform_6, window_bounds = array<i64: 1, 128>}, {pipeline_mode = #tpu.pipeline_mode<synchronous>, transform_indices = @transform_7, window_bounds = array<i64: 128, 128>}, {pipeline_mode = #tpu.pipeline_mode<synchronous>, transform_indices = @transform_8, window_bounds = array<i64: 1, 128>}, {pipeline_mode = #tpu.pipeline_mode<synchronous>, transform_indices = @transform_9, window_bounds = array<i64: 128, 128>}, {pipeline_mode = #tpu.pipeline_mode<synchronous>, transform_indices = @transform_10, window_bounds = array<i64: 1, 128>}, {pipeline_mode = #tpu.pipeline_mode<synchronous>, transform_indices = @transform_11, window_bounds = array<i64: 128, 8>}, {pipeline_mode = #tpu.pipeline_mode<synchronous>, transform_indices = @transform_12, window_bounds = array<i64: 1, 8>}, {transform_indices = @transform_13, window_bounds = array<i64: 8, 256>}, {transform_indices = @transform_14, window_bounds = array<i64: 8, 8>}]} {
    %c0 = arith.constant 0 : index
    %c0_0 = arith.constant 0 : index
    %0 = vector.load %arg1[%c0, %c0_0] : memref<8x256xf32, #tpu.memory_space<vmem>>, vector<8x256xf32>
    %c0_1 = arith.constant 0 : index
    %c0_2 = arith.constant 0 : index
    %1 = vector.load %arg2[%c0_1, %c0_2] : memref<256x128xf32, #tpu.memory_space<vmem>>, vector<256x128xf32>
    %cst = arith.constant dense<0.000000e+00> : vector<8x128xf32>
    %2 = tpu.matmul %0, %1, %cst {dimension_numbers = #tpu.dot_dimension_numbers<[1], [0], [0], [1], [0, 0, 1, 1], [], []>} : vector<8x256xf32>, vector<256x128xf32>, vector<8x128xf32> -> vector<8x128xf32>
    %c0_3 = arith.constant 0 : index
    %c0_4 = arith.constant 0 : index
    %3 = vector.load %arg3[%c0_3, %c0_4] : memref<1x128xf32, #tpu.memory_space<vmem>>, vector<1x128xf32>
    %4 = vector.broadcast %3 : vector<1x128xf32> to vector<8x128xf32>
    %5 = arith.addf %2, %4 : vector<8x128xf32>
    %cst_5 = arith.constant 0.000000e+00 : f32
    %6 = vector.broadcast %cst_5 : f32 to vector<8x128xf32>
    %7 = arith.maximumf %5, %6 : vector<8x128xf32>
    %c0_6 = arith.constant 0 : index
    %c0_7 = arith.constant 0 : index
    %8 = vector.load %arg4[%c0_6, %c0_7] : memref<128x128xf32, #tpu.memory_space<vmem>>, vector<128x128xf32>
    %cst_8 = arith.constant dense<0.000000e+00> : vector<8x128xf32>
    %9 = tpu.matmul %7, %8, %cst_8 {dimension_numbers = #tpu.dot_dimension_numbers<[1], [0], [0], [1], [0, 0, 1, 1], [], []>} : vector<8x128xf32>, vector<128x128xf32>, vector<8x128xf32> -> vector<8x128xf32>
    %c0_9 = arith.constant 0 : index
    %c0_10 = arith.constant 0 : index
    %10 = vector.load %arg5[%c0_9, %c0_10] : memref<1x128xf32, #tpu.memory_space<vmem>>, vector<1x128xf32>
    %11 = vector.broadcast %10 : vector<1x128xf32> to vector<8x128xf32>
    %12 = arith.addf %9, %11 : vector<8x128xf32>
    %cst_11 = arith.constant 0.000000e+00 : f32
    %13 = vector.broadcast %cst_11 : f32 to vector<8x128xf32>
    %14 = arith.maximumf %12, %13 : vector<8x128xf32>
    %c0_12 = arith.constant 0 : index
    %c0_13 = arith.constant 0 : index
    %15 = vector.load %arg6[%c0_12, %c0_13] : memref<128x128xf32, #tpu.memory_space<vmem>>, vector<128x128xf32>
    %cst_14 = arith.constant dense<0.000000e+00> : vector<8x128xf32>
    %16 = tpu.matmul %14, %15, %cst_14 {dimension_numbers = #tpu.dot_dimension_numbers<[1], [0], [0], [1], [0, 0, 1, 1], [], []>} : vector<8x128xf32>, vector<128x128xf32>, vector<8x128xf32> -> vector<8x128xf32>
    %c0_15 = arith.constant 0 : index
    %c0_16 = arith.constant 0 : index
    %17 = vector.load %arg7[%c0_15, %c0_16] : memref<1x128xf32, #tpu.memory_space<vmem>>, vector<1x128xf32>
    %18 = vector.broadcast %17 : vector<1x128xf32> to vector<8x128xf32>
    %19 = arith.addf %16, %18 : vector<8x128xf32>
    %cst_17 = arith.constant 0.000000e+00 : f32
    %20 = vector.broadcast %cst_17 : f32 to vector<8x128xf32>
    %21 = arith.maximumf %19, %20 : vector<8x128xf32>
    %c0_18 = arith.constant 0 : index
    %c0_19 = arith.constant 0 : index
    %22 = vector.load %arg8[%c0_18, %c0_19] : memref<128x128xf32, #tpu.memory_space<vmem>>, vector<128x128xf32>
    %cst_20 = arith.constant dense<0.000000e+00> : vector<8x128xf32>
    %23 = tpu.matmul %21, %22, %cst_20 {dimension_numbers = #tpu.dot_dimension_numbers<[1], [0], [0], [1], [0, 0, 1, 1], [], []>} : vector<8x128xf32>, vector<128x128xf32>, vector<8x128xf32> -> vector<8x128xf32>
    %c0_21 = arith.constant 0 : index
    %c0_22 = arith.constant 0 : index
    %24 = vector.load %arg9[%c0_21, %c0_22] : memref<1x128xf32, #tpu.memory_space<vmem>>, vector<1x128xf32>
    %25 = vector.broadcast %24 : vector<1x128xf32> to vector<8x128xf32>
    %26 = arith.addf %23, %25 : vector<8x128xf32>
    %cst_23 = arith.constant 0.000000e+00 : f32
    %27 = vector.broadcast %cst_23 : f32 to vector<8x128xf32>
    %28 = arith.maximumf %26, %27 : vector<8x128xf32>
    %c0_24 = arith.constant 0 : index
    %c0_25 = arith.constant 0 : index
    %29 = vector.load %arg10[%c0_24, %c0_25] : memref<128x128xf32, #tpu.memory_space<vmem>>, vector<128x128xf32>
    %cst_26 = arith.constant dense<0.000000e+00> : vector<8x128xf32>
    %30 = tpu.matmul %28, %29, %cst_26 {dimension_numbers = #tpu.dot_dimension_numbers<[1], [0], [0], [1], [0, 0, 1, 1], [], []>} : vector<8x128xf32>, vector<128x128xf32>, vector<8x128xf32> -> vector<8x128xf32>
    %c0_27 = arith.constant 0 : index
    %c0_28 = arith.constant 0 : index
    %31 = vector.load %arg11[%c0_27, %c0_28] : memref<1x128xf32, #tpu.memory_space<vmem>>, vector<1x128xf32>
    %32 = vector.broadcast %31 : vector<1x128xf32> to vector<8x128xf32>
    %33 = arith.addf %30, %32 : vector<8x128xf32>
    %cst_29 = arith.constant 0.000000e+00 : f32
    %34 = vector.broadcast %cst_29 : f32 to vector<8x128xf32>
    %35 = arith.maximumf %33, %34 : vector<8x128xf32>
    %c0_30 = arith.constant 0 : index
    %c0_31 = arith.constant 0 : index
    %36 = vector.load %arg12[%c0_30, %c0_31] : memref<128x8xf32, #tpu.memory_space<vmem>>, vector<128x8xf32>
    %cst_32 = arith.constant dense<0.000000e+00> : vector<8x8xf32>
    %37 = tpu.matmul %35, %36, %cst_32 {dimension_numbers = #tpu.dot_dimension_numbers<[1], [0], [0], [1], [0, 0, 1, 1], [], []>} : vector<8x128xf32>, vector<128x8xf32>, vector<8x8xf32> -> vector<8x8xf32>
    %c0_33 = arith.constant 0 : index
    %c0_34 = arith.constant 0 : index
    %38 = vector.load %arg13[%c0_33, %c0_34] : memref<1x8xf32, #tpu.memory_space<vmem>>, vector<1x8xf32>
    %39 = vector.broadcast %38 : vector<1x8xf32> to vector<8x8xf32>
    %40 = arith.addf %37, %39 : vector<8x8xf32>
    %41 = vector.extract_strided_slice %12 {offsets = [0, 0], sizes = [8, 64], strides = [1, 1]} : vector<8x128xf32> to vector<8x64xf32>
    %42 = vector.extract_strided_slice %26 {offsets = [0, 0], sizes = [8, 32], strides = [1, 1]} : vector<8x128xf32> to vector<8x32xf32>
    %43 = vector.extract_strided_slice %33 {offsets = [0, 0], sizes = [8, 16], strides = [1, 1]} : vector<8x128xf32> to vector<8x16xf32>
    %44 = vector.extract_strided_slice %35 {offsets = [0, 0], sizes = [8, 16], strides = [1, 1]} : vector<8x128xf32> to vector<8x16xf32>
    %45 = tpu.concatenate %5, %41, %42, %43, %44 in 1 : vector<8x128xf32>, vector<8x64xf32>, vector<8x32xf32>, vector<8x16xf32>, vector<8x16xf32> -> vector<8x256xf32>
    %c0_35 = arith.constant 0 : index
    %c0_36 = arith.constant 0 : index
    %46 = vector.load %arg14[%c0_35, %c0_36] : memref<8x256xf32, #tpu.memory_space<vmem>>, vector<8x256xf32>
    tpu.vector_store %arg14[%c0_35, %c0_36], %45 {strides = array<i32>} : memref<8x256xf32, #tpu.memory_space<vmem>>, vector<8x256xf32>,
    %c0_37 = arith.constant 0 : index
    %c0_38 = arith.constant 0 : index
    %47 = vector.load %arg15[%c0_37, %c0_38] : memref<8x8xf32, #tpu.memory_space<vmem>>, vector<8x8xf32>
    tpu.vector_store %arg15[%c0_37, %c0_38], %40 {strides = array<i32>} : memref<8x8xf32, #tpu.memory_space<vmem>>, vector<8x8xf32>,
    return
  }
  func.func @transform_0(%arg0: i32) -> (i32, i32) {
    %c0_i32 = arith.constant 0 : i32
    %c0_i32_0 = arith.constant 0 : i32
    return %arg0, %c0_i32 : i32, i32
  }
  func.func @transform_1(%arg0: i32) -> (i32, i32) {
    %c0_i32 = arith.constant 0 : i32
    %c0_i32_0 = arith.constant 0 : i32
    %c0_i32_1 = arith.constant 0 : i32
    return %c0_i32, %c0_i32_0 : i32, i32
  }
  func.func @transform_2(%arg0: i32) -> (i32, i32) {
    %c0_i32 = arith.constant 0 : i32
    %c0_i32_0 = arith.constant 0 : i32
    %c0_i32_1 = arith.constant 0 : i32
    return %c0_i32, %c0_i32_0 : i32, i32
  }
  func.func @transform_3(%arg0: i32) -> (i32, i32) {
    %c0_i32 = arith.constant 0 : i32
    %c0_i32_0 = arith.constant 0 : i32
    %c0_i32_1 = arith.constant 0 : i32
    return %c0_i32, %c0_i32_0 : i32, i32
  }
  func.func @transform_4(%arg0: i32) -> (i32, i32) {
    %c0_i32 = arith.constant 0 : i32
    %c0_i32_0 = arith.constant 0 : i32
    %c0_i32_1 = arith.constant 0 : i32
    return %c0_i32, %c0_i32_0 : i32, i32
  }
  func.func @transform_5(%arg0: i32) -> (i32, i32) {
    %c0_i32 = arith.constant 0 : i32
    %c0_i32_0 = arith.constant 0 : i32
    %c0_i32_1 = arith.constant 0 : i32
    return %c0_i32, %c0_i32_0 : i32, i32
  }
  func.func @transform_6(%arg0: i32) -> (i32, i32) {
    %c0_i32 = arith.constant 0 : i32
    %c0_i32_0 = arith.constant 0 : i32
    %c0_i32_1 = arith.constant 0 : i32
    return %c0_i32, %c0_i32_0 : i32, i32
  }
  func.func @transform_7(%arg0: i32) -> (i32, i32) {
    %c0_i32 = arith.constant 0 : i32
    %c0_i32_0 = arith.constant 0 : i32
    %c0_i32_1 = arith.constant 0 : i32
    return %c0_i32, %c0_i32_0 : i32, i32
  }
  func.func @transform_8(%arg0: i32) -> (i32, i32) {
    %c0_i32 = arith.constant 0 : i32
    %c0_i32_0 = arith.constant 0 : i32
    %c0_i32_1 = arith.constant 0 : i32
    return %c0_i32, %c0_i32_0 : i32, i32
  }
  func.func @transform_9(%arg0: i32) -> (i32, i32) {
    %c0_i32 = arith.constant 0 : i32
    %c0_i32_0 = arith.constant 0 : i32
    %c0_i32_1 = arith.constant 0 : i32
    return %c0_i32, %c0_i32_0 : i32, i32
  }
  func.func @transform_10(%arg0: i32) -> (i32, i32) {
    %c0_i32 = arith.constant 0 : i32
    %c0_i32_0 = arith.constant 0 : i32
    %c0_i32_1 = arith.constant 0 : i32
    return %c0_i32, %c0_i32_0 : i32, i32
  }
  func.func @transform_11(%arg0: i32) -> (i32, i32) {
    %c0_i32 = arith.constant 0 : i32
    %c0_i32_0 = arith.constant 0 : i32
    %c0_i32_1 = arith.constant 0 : i32
    return %c0_i32, %c0_i32_0 : i32, i32
  }
  func.func @transform_12(%arg0: i32) -> (i32, i32) {
    %c0_i32 = arith.constant 0 : i32
    %c0_i32_0 = arith.constant 0 : i32
    %c0_i32_1 = arith.constant 0 : i32
    return %c0_i32, %c0_i32_0 : i32, i32
  }
  func.func @transform_13(%arg0: i32) -> (i32, i32) {
    %c0_i32 = arith.constant 0 : i32
    %c0_i32_0 = arith.constant 0 : i32
    return %arg0, %c0_i32 : i32, i32
  }
  func.func @transform_14(%arg0: i32) -> (i32, i32) {
    %c0_i32 = arith.constant 0 : i32
    %c0_i32_0 = arith.constant 0 : i32
    return %arg0, %c0_i32 : i32, i32
  }
}

</mosaic_0001>

<llo_original>
// kernel: tpu_custom_call.1
$region0: #{tpu_custom_call.1}
  #allocation0 [shape = 'u32[]', space=smem, size = 0x4, offset = 0x4, fixed_abs, tag = 'smem constant byte address 0x4 - core index']
  #allocation1 [shape = 'u32[72,128]{1,0:T(1,128)}', space=vmem, size = 0x9000, scoped, tag = 'internal scratch']
  %s0 = inlined_call_operand.hbm [shape: f32[8,256], index: 0, kind: input, shape index: {}]
  %s1 = inlined_call_operand.hbm [shape: f32[256,128], index: 1, kind: input, shape index: {}]
  %s2 = inlined_call_operand.vmem [shape: f32[1,128], index: 2, kind: input, shape index: {}]
  %s3 = inlined_call_operand.vmem [shape: f32[128,128], index: 3, kind: input, shape index: {}]
  %s4 = inlined_call_operand.vmem [shape: f32[1,128], index: 4, kind: input, shape index: {}]
  %s5 = inlined_call_operand.hbm [shape: f32[128,128], index: 5, kind: input, shape index: {}]
  %s6 = inlined_call_operand.vmem [shape: f32[1,128], index: 6, kind: input, shape index: {}]
  %s7 = inlined_call_operand.hbm [shape: f32[128,128], index: 7, kind: input, shape index: {}]
  %s8 = inlined_call_operand.vmem [shape: f32[1,128], index: 8, kind: input, shape index: {}]
  %s9 = inlined_call_operand.hbm [shape: f32[128,128], index: 9, kind: input, shape index: {}]
  %s10 = inlined_call_operand.vmem [shape: f32[1,128], index: 10, kind: input, shape index: {}]
  %s11 = inlined_call_operand.vmem [shape: f32[128,8], index: 11, kind: input, shape index: {}]
  %s12 = inlined_call_operand.vmem [shape: f32[1,8], index: 12, kind: input, shape index: {}]
  %s13 = inlined_call_operand.hbm [shape: f32[8,256], index: 13, kind: output, shape index: {0}]
  %s14 = inlined_call_operand.hbm [shape: f32[8,8], index: 14, kind: output, shape index: {1}]
  %15 = xla_tuple %s13, %s14
  %s16 = sld [smem:[#allocation0]]
  $region90: #{tpu_custom_call.1} parent=0
    _
  %s18 = ssub.s32 1, %s16
  %s19 = scalar_select 0, %s18, %s16
  $region1: #{tpu_custom_call.1} parent=0
    #allocation2 [shape = 'u8[8192]{0}', space=vmem, size = 0x2000, scoped, tag = 'input window, operand 0, single buffered']
    #allocation3 [shape = 's32[1]{0}', space=sflag, size = 0x4, scoped, tag = 'scoped memory for tpu_custom_call.1']
    #allocation4 [shape = 's32[1]{0}', space=sflag, size = 0x4, scoped, tag = 'scoped memory for tpu_custom_call.1']
    #allocation5 [shape = 'u8[131072]{0}', space=vmem, size = 0x20000, scoped, tag = 'input window, operand 1, single buffered']
    #allocation6 [shape = 's32[1]{0}', space=sflag, size = 0x4, scoped, tag = 'scoped memory for tpu_custom_call.1']
    #allocation7 [shape = 'u8[65536]{0}', space=vmem, size = 0x10000, scoped, tag = 'input window, operand 5, single buffered']
    #allocation8 [shape = 'u8[65536]{0}', space=vmem, size = 0x10000, scoped, tag = 'input window, operand 7, single buffered']
    #allocation9 [shape = 's32[1]{0}', space=sflag, size = 0x4, scoped, tag = 'scoped memory for tpu_custom_call.1']
    #allocation10 [shape = 'u8[65536]{0}', space=vmem, size = 0x10000, scoped, tag = 'input window, operand 9, single buffered']
    #allocation11 [shape = 'u8[8192]{0}', space=vmem, size = 0x2000, scoped, tag = 'output window, operand 0, single buffered']
    #allocation12 [shape = 'u8[4096]{0}', space=vmem, size = 0x1000, scoped, tag = 'output window, operand 1, single buffered']
    #allocation13 [shape = 's32[1]{0}', space=sflag, size = 0x4, scoped, tag = 'scoped memory for tpu_custom_call.1']
    %20 = vsyncpa [#allocation3], 0
    %21 = vsyncpa [#allocation6], 0
    %22 = vsyncpa [#allocation9], 0
    %23 = vsyncpa [#allocation4], 0
    %24 = vsyncpa [#allocation13], 0
    // Predicated region
    $region2: #{tpu_custom_call.1} parent=1 // pred_check
      _
    $region3: #{tpu_custom_call.1} parent=1 // pred_check_branch
      %26 = sbr.rel (0) target = $region5
    $region4: #{tpu_custom_call.1} parent=1 // pred_region
      %28 = vsyncadd [#allocation3], 0
      %s30 = sshll.u32 %s0, 4
      %s31 = int_to_ptr.hbm [resolvable:$true] %s30
      %s32 = sshll.u32 [#allocation2], 4
      %s33 = int_to_ptr.vmem [resolvable:$true] %s32
      %35 = dma.hbm_to_vmem [thread:$0]  %s31, 256, %s33, [#allocation3]
    $region5: #{tpu_custom_call.1} parent=1 // pred_fallthru
      _
    // Predicated region
    $region6: #{tpu_custom_call.1} parent=1 // pred_check
      _
    $region7: #{tpu_custom_call.1} parent=1 // pred_check_branch
      %37 = sbr.rel (0) target = $region9
    $region8: #{tpu_custom_call.1} parent=1 // pred_region
      %39 = vsyncadd [#allocation6], 0
      %s40 = sshll.u32 %s1, 4
      %s41 = int_to_ptr.hbm [resolvable:$true] %s40
      %s42 = sshll.u32 [#allocation5], 4
      %s43 = int_to_ptr.vmem [resolvable:$true] %s42
      %48 = dma.hbm_to_vmem [thread:$0]  %s41, 4096, %s43, [#allocation6], 128, 128, 8
    $region9: #{tpu_custom_call.1} parent=1 // pred_fallthru
      _
    // Predicated region
    $region10: #{tpu_custom_call.1} parent=1 // pred_check
      _
    $region11: #{tpu_custom_call.1} parent=1 // pred_check_branch
      %50 = sbr.rel (0) target = $region13
    $region12: #{tpu_custom_call.1} parent=1 // pred_region
      _
    $region13: #{tpu_custom_call.1} parent=1 // pred_fallthru
      _
    // Predicated region
    $region14: #{tpu_custom_call.1} parent=1 // pred_check
      _
    $region15: #{tpu_custom_call.1} parent=1 // pred_check_branch
      %52 = sbr.rel (0) target = $region17
    $region16: #{tpu_custom_call.1} parent=1 // pred_region
      _
    $region17: #{tpu_custom_call.1} parent=1 // pred_fallthru
      _
    // Predicated region
    $region18: #{tpu_custom_call.1} parent=1 // pred_check
      _
    $region19: #{tpu_custom_call.1} parent=1 // pred_check_branch
      %54 = sbr.rel (0) target = $region21
    $region20: #{tpu_custom_call.1} parent=1 // pred_region
      _
    $region21: #{tpu_custom_call.1} parent=1 // pred_fallthru
      _
    // Predicated region
    $region22: #{tpu_custom_call.1} parent=1 // pred_check
      _
    $region23: #{tpu_custom_call.1} parent=1 // pred_check_branch
      %56 = sbr.rel (0) target = $region25
    $region24: #{tpu_custom_call.1} parent=1 // pred_region
      %58 = vsyncadd [#allocation6], 0
      %s59 = sshll.u32 %s5, 4
      %s60 = int_to_ptr.hbm [resolvable:$true] %s59
      %s61 = sshll.u32 [#allocation7], 4
      %s62 = int_to_ptr.vmem [resolvable:$true] %s61
      %67 = dma.hbm_to_vmem [thread:$0]  %s60, 2048, %s62, [#allocation6], 128, 128, 8
    $region25: #{tpu_custom_call.1} parent=1 // pred_fallthru
      _
    // Predicated region
    $region26: #{tpu_custom_call.1} parent=1 // pred_check
      _
    $region27: #{tpu_custom_call.1} parent=1 // pred_check_branch
      %69 = sbr.rel (0) target = $region29
    $region28: #{tpu_custom_call.1} parent=1 // pred_region
      _
    $region29: #{tpu_custom_call.1} parent=1 // pred_fallthru
      _
    // Predicated region
    $region30: #{tpu_custom_call.1} parent=1 // pred_check
      _
    $region31: #{tpu_custom_call.1} parent=1 // pred_check_branch
      %71 = sbr.rel (0) target = $region33
    $region32: #{tpu_custom_call.1} parent=1 // pred_region
      %73 = vsyncadd [#allocation9], 0
      %s74 = sshll.u32 %s7, 4
      %s75 = int_to_ptr.hbm [resolvable:$true] %s74
      %s76 = sshll.u32 [#allocation8], 4
      %s77 = int_to_ptr.vmem [resolvable:$true] %s76
      %82 = dma.hbm_to_vmem [thread:$0]  %s75, 2048, %s77, [#allocation9], 128, 128, 8
    $region33: #{tpu_custom_call.1} parent=1 // pred_fallthru
      _
    // Predicated region
    $region34: #{tpu_custom_call.1} parent=1 // pred_check
      _
    $region35: #{tpu_custom_call.1} parent=1 // pred_check_branch
      %84 = sbr.rel (0) target = $region37
    $region36: #{tpu_custom_call.1} parent=1 // pred_region
      _
    $region37: #{tpu_custom_call.1} parent=1 // pred_fallthru
      _
    // Predicated region
    $region38: #{tpu_custom_call.1} parent=1 // pred_check
      _
    $region39: #{tpu_custom_call.1} parent=1 // pred_check_branch
      %86 = sbr.rel (0) target = $region41
    $region40: #{tpu_custom_call.1} parent=1 // pred_region
      %88 = vsyncadd [#allocation9], 0
      %s89 = sshll.u32 %s9, 4
      %s90 = int_to_ptr.hbm [resolvable:$true] %s89
      %s91 = sshll.u32 [#allocation10], 4
      %s92 = int_to_ptr.vmem [resolvable:$true] %s91
      %97 = dma.hbm_to_vmem [thread:$0]  %s90, 2048, %s92, [#allocation9], 128, 128, 8
    $region41: #{tpu_custom_call.1} parent=1 // pred_fallthru
      _
    // Predicated region
    $region42: #{tpu_custom_call.1} parent=1 // pred_check
      _
    $region43: #{tpu_custom_call.1} parent=1 // pred_check_branch
      %99 = sbr.rel (0) target = $region45
    $region44: #{tpu_custom_call.1} parent=1 // pred_region
      _
    $region45: #{tpu_custom_call.1} parent=1 // pred_fallthru
      _
    // Predicated region
    $region46: #{tpu_custom_call.1} parent=1 // pred_check
      _
    $region47: #{tpu_custom_call.1} parent=1 // pred_check_branch
      %101 = sbr.rel (0) target = $region49
    $region48: #{tpu_custom_call.1} parent=1 // pred_region
      _
    $region49: #{tpu_custom_call.1} parent=1 // pred_fallthru
      _
    // Predicated region
    $region50: #{tpu_custom_call.1} parent=1 // pred_check
      _
    $region51: #{tpu_custom_call.1} parent=1 // pred_check_branch
      %103 = sbr.rel (0) target = $region53
    $region52: #{tpu_custom_call.1} parent=1 // pred_region
      _
    $region53: #{tpu_custom_call.1} parent=1 // pred_fallthru
      _
    // Predicated region
    $region54: #{tpu_custom_call.1} parent=1 // pred_check
      _
    $region55: #{tpu_custom_call.1} parent=1 // pred_check_branch
      %105 = sbr.rel (0) target = $region57
    $region56: #{tpu_custom_call.1} parent=1 // pred_region
      %107 = dma.done [#allocation3], 256
    $region57: #{tpu_custom_call.1} parent=1 // pred_fallthru
      _
    // Predicated region
    $region58: #{tpu_custom_call.1} parent=1 // pred_check
      _
    $region59: #{tpu_custom_call.1} parent=1 // pred_check_branch
      %109 = sbr.rel (0) target = $region61
    $region60: #{tpu_custom_call.1} parent=1 // pred_region
      %111 = dma.done [#allocation6], 4096
    $region61: #{tpu_custom_call.1} parent=1 // pred_fallthru
      _
    // Predicated region
    $region62: #{tpu_custom_call.1} parent=1 // pred_check
      _
    $region63: #{tpu_custom_call.1} parent=1 // pred_check_branch
      %113 = sbr.rel (0) target = $region65
    $region64: #{tpu_custom_call.1} parent=1 // pred_region
      %115 = dma.done [#allocation6], 2048
    $region65: #{tpu_custom_call.1} parent=1 // pred_fallthru
      _
    // Predicated region
    $region66: #{tpu_custom_call.1} parent=1 // pred_check
      _
    $region67: #{tpu_custom_call.1} parent=1 // pred_check_branch
      %117 = sbr.rel (0) target = $region69
    $region68: #{tpu_custom_call.1} parent=1 // pred_region
      %119 = dma.done [#allocation9], 2048
    $region69: #{tpu_custom_call.1} parent=1 // pred_fallthru
      _
    // Predicated region
    $region70: #{tpu_custom_call.1} parent=1 // pred_check
      _
    $region71: #{tpu_custom_call.1} parent=1 // pred_check_branch
      %121 = sbr.rel (0) target = $region73
    $region72: #{tpu_custom_call.1} parent=1 // pred_region
      %123 = dma.done [#allocation9], 2048
    $region73: #{tpu_custom_call.1} parent=1 // pred_fallthru
      _
    %v124 = vld [vmem:[#allocation2] sm:$0xff]
    %v125 = vld [vmem:[#allocation2 + $0x8] sm:$0xff]
    %v126 = vld [vmem:[#allocation5] sm:$0xff]
    %v127 = vld [vmem:[#allocation5 + $0x8] sm:$0xff]
    %v128 = vld [vmem:[#allocation5 + $0x10] sm:$0xff]
    %v129 = vld [vmem:[#allocation5 + $0x18] sm:$0xff]
    %v130 = vld [vmem:[#allocation5 + $0x20] sm:$0xff]
    %v131 = vld [vmem:[#allocation5 + $0x28] sm:$0xff]
    %v132 = vld [vmem:[#allocation5 + $0x30] sm:$0xff]
    %v133 = vld [vmem:[#allocation5 + $0x38] sm:$0xff]
    %v134 = vld [vmem:[#allocation5 + $0x40] sm:$0xff]
    %v135 = vld [vmem:[#allocation5 + $0x48] sm:$0xff]
    %v136 = vld [vmem:[#allocation5 + $0x50] sm:$0xff]
    %v137 = vld [vmem:[#allocation5 + $0x58] sm:$0xff]
    %v138 = vld [vmem:[#allocation5 + $0x60] sm:$0xff]
    %v139 = vld [vmem:[#allocation5 + $0x68] sm:$0xff]
    %v140 = vld [vmem:[#allocation5 + $0x70] sm:$0xff]
    %v141 = vld [vmem:[#allocation5 + $0x78] sm:$0xff]
    %v142 = vld [vmem:[#allocation5 + $0x80] sm:$0xff]
    %v143 = vld [vmem:[#allocation5 + $0x88] sm:$0xff]
    %v144 = vld [vmem:[#allocation5 + $0x90] sm:$0xff]
    %v145 = vld [vmem:[#allocation5 + $0x98] sm:$0xff]
    %v146 = vld [vmem:[#allocation5 + $0xa0] sm:$0xff]
    %v147 = vld [vmem:[#allocation5 + $0xa8] sm:$0xff]
    %v148 = vld [vmem:[#allocation5 + $0xb0] sm:$0xff]
    %v149 = vld [vmem:[#allocation5 + $0xb8] sm:$0xff]
    %v150 = vld [vmem:[#allocation5 + $0xc0] sm:$0xff]
    %v151 = vld [vmem:[#allocation5 + $0xc8] sm:$0xff]
    %v152 = vld [vmem:[#allocation5 + $0xd0] sm:$0xff]
    %v153 = vld [vmem:[#allocation5 + $0xd8] sm:$0xff]
    %v154 = vld [vmem:[#allocation5 + $0xe0] sm:$0xff]
    %v155 = vld [vmem:[#allocation5 + $0xe8] sm:$0xff]
    %v156 = vld [vmem:[#allocation5 + $0xf0] sm:$0xff]
    %v157 = vld [vmem:[#allocation5 + $0xf8] sm:$0xff]
    %v158 = vld [vmem:[%s2] sm:$0x1]
    %v160 = vperm.slane %v158, 0
    %162 = vmatpush.msra.mxu0 %v141
    %163 = vmatpush.msra.mxu0 %v140
    %164 = vmatpush.msra.mxu0 %v139
    %165 = vmatpush.msra.mxu0 %v138
    %166 = vmatpush.msra.mxu0 %v137
    %167 = vmatpush.msra.mxu0 %v136
    %168 = vmatpush.msra.mxu0 %v135
    %169 = vmatpush.msra.mxu0 %v134
    %170 = vmatpush.msra.mxu0 %v133
    %171 = vmatpush.msra.mxu0 %v132
    %172 = vmatpush.msra.mxu0 %v131
    %173 = vmatpush.msra.mxu0 %v130
    %174 = vmatpush.msra.mxu0 %v129
    %175 = vmatpush.msra.mxu0 %v128
    %176 = vmatpush.msra.mxu0 %v127
    %177 = vmatpush.msra.mxu0 %v126
    %178 = vmatmul.f32.gmra.mxu0 %v124
    %v179 = vpop.f32.mrf.mxu0
    %v180 = vadd.f32 %v160, %v179
    %181 = vdwg.mxu0
    %182 = vmatpush.msra.mxu0 %v157
    %183 = vmatpush.msra.mxu0 %v156
    %184 = vmatpush.msra.mxu0 %v155
    %185 = vmatpush.msra.mxu0 %v154
    %186 = vmatpush.msra.mxu0 %v153
    %187 = vmatpush.msra.mxu0 %v152
    %188 = vmatpush.msra.mxu0 %v151
    %189 = vmatpush.msra.mxu0 %v150
    %190 = vmatpush.msra.mxu0 %v149
    %191 = vmatpush.msra.mxu0 %v148
    %192 = vmatpush.msra.mxu0 %v147
    %193 = vmatpush.msra.mxu0 %v146
    %194 = vmatpush.msra.mxu0 %v145
    %195 = vmatpush.msra.mxu0 %v144
    %196 = vmatpush.msra.mxu0 %v143
    %197 = vmatpush.msra.mxu0 %v142
    %198 = vmatmul.f32.gmra.mxu0 %v125
    %v199 = vpop.f32.mrf.mxu0
    %v200 = vadd.f32 %v180, %v199
    %201 = vdwg.mxu0
    %v202 = vmax.f32 %v200, 0.0
    %v203 = vld [vmem:[%s3] sm:$0xff]
    %v204 = vld [vmem:[%s3 + $0x8] sm:$0xff]
    %v205 = vld [vmem:[%s3 + $0x10] sm:$0xff]
    %v206 = vld [vmem:[%s3 + $0x18] sm:$0xff]
    %v207 = vld [vmem:[%s3 + $0x20] sm:$0xff]
    %v208 = vld [vmem:[%s3 + $0x28] sm:$0xff]
    %v209 = vld [vmem:[%s3 + $0x30] sm:$0xff]
    %v210 = vld [vmem:[%s3 + $0x38] sm:$0xff]
    %v211 = vld [vmem:[%s3 + $0x40] sm:$0xff]
    %v212 = vld [vmem:[%s3 + $0x48] sm:$0xff]
    %v213 = vld [vmem:[%s3 + $0x50] sm:$0xff]
    %v214 = vld [vmem:[%s3 + $0x58] sm:$0xff]
    %v215 = vld [vmem:[%s3 + $0x60] sm:$0xff]
    %v216 = vld [vmem:[%s3 + $0x68] sm:$0xff]
    %v217 = vld [vmem:[%s3 + $0x70] sm:$0xff]
    %v218 = vld [vmem:[%s3 + $0x78] sm:$0xff]
    %v219 = vld [vmem:[%s4] sm:$0x1]
    %v221 = vperm.slane %v219, 0
    %223 = vmatpush.msra.mxu0 %v218
    %224 = vmatpush.msra.mxu0 %v217
    %225 = vmatpush.msra.mxu0 %v216
    %226 = vmatpush.msra.mxu0 %v215
    %227 = vmatpush.msra.mxu0 %v214
    %228 = vmatpush.msra.mxu0 %v213
    %229 = vmatpush.msra.mxu0 %v212
    %230 = vmatpush.msra.mxu0 %v211
    %231 = vmatpush.msra.mxu0 %v210
    %232 = vmatpush.msra.mxu0 %v209
    %233 = vmatpush.msra.mxu0 %v208
    %234 = vmatpush.msra.mxu0 %v207
    %235 = vmatpush.msra.mxu0 %v206
    %236 = vmatpush.msra.mxu0 %v205
    %237 = vmatpush.msra.mxu0 %v204
    %238 = vmatpush.msra.mxu0 %v203
    %239 = vmatmul.f32.gmra.mxu0 %v202
    %v240 = vpop.f32.mrf.mxu0
    %v241 = vadd.f32 %v221, %v240
    %242 = vdwg.mxu0
    %v243 = vmax.f32 %v241, 0.0
    %v244 = vld [vmem:[#allocation7] sm:$0xff]
    %v245 = vld [vmem:[#allocation7 + $0x8] sm:$0xff]
    %v246 = vld [vmem:[#allocation7 + $0x10] sm:$0xff]
    %v247 = vld [vmem:[#allocation7 + $0x18] sm:$0xff]
    %v248 = vld [vmem:[#allocation7 + $0x20] sm:$0xff]
    %v249 = vld [vmem:[#allocation7 + $0x28] sm:$0xff]
    %v250 = vld [vmem:[#allocation7 + $0x30] sm:$0xff]
    %v251 = vld [vmem:[#allocation7 + $0x38] sm:$0xff]
    %v252 = vld [vmem:[#allocation7 + $0x40] sm:$0xff]
    %v253 = vld [vmem:[#allocation7 + $0x48] sm:$0xff]
    %v254 = vld [vmem:[#allocation7 + $0x50] sm:$0xff]
    %v255 = vld [vmem:[#allocation7 + $0x58] sm:$0xff]
    %v256 = vld [vmem:[#allocation7 + $0x60] sm:$0xff]
    %v257 = vld [vmem:[#allocation7 + $0x68] sm:$0xff]
    %v258 = vld [vmem:[#allocation7 + $0x70] sm:$0xff]
    %v259 = vld [vmem:[#allocation7 + $0x78] sm:$0xff]
    %v260 = vld [vmem:[%s6] sm:$0x1]
    %v262 = vperm.slane %v260, 0
    %264 = vmatpush.msra.mxu0 %v259
    %265 = vmatpush.msra.mxu0 %v258
    %266 = vmatpush.msra.mxu0 %v257
    %267 = vmatpush.msra.mxu0 %v256
    %268 = vmatpush.msra.mxu0 %v255
    %269 = vmatpush.msra.mxu0 %v254
    %270 = vmatpush.msra.mxu0 %v253
    %271 = vmatpush.msra.mxu0 %v252
    %272 = vmatpush.msra.mxu0 %v251
    %273 = vmatpush.msra.mxu0 %v250
    %274 = vmatpush.msra.mxu0 %v249
    %275 = vmatpush.msra.mxu0 %v248
    %276 = vmatpush.msra.mxu0 %v247
    %277 = vmatpush.msra.mxu0 %v246
    %278 = vmatpush.msra.mxu0 %v245
    %279 = vmatpush.msra.mxu0 %v244
    %280 = vmatmul.f32.gmra.mxu0 %v243
    %v281 = vpop.f32.mrf.mxu0
    %v282 = vadd.f32 %v262, %v281
    %283 = vdwg.mxu0
    %v284 = vmax.f32 %v282, 0.0
    %v285 = vld [vmem:[#allocation8] sm:$0xff]
    %v286 = vld [vmem:[#allocation8 + $0x8] sm:$0xff]
    %v287 = vld [vmem:[#allocation8 + $0x10] sm:$0xff]
    %v288 = vld [vmem:[#allocation8 + $0x18] sm:$0xff]
    %v289 = vld [vmem:[#allocation8 + $0x20] sm:$0xff]
    %v290 = vld [vmem:[#allocation8 + $0x28] sm:$0xff]
    %v291 = vld [vmem:[#allocation8 + $0x30] sm:$0xff]
    %v292 = vld [vmem:[#allocation8 + $0x38] sm:$0xff]
    %v293 = vld [vmem:[#allocation8 + $0x40] sm:$0xff]
    %v294 = vld [vmem:[#allocation8 + $0x48] sm:$0xff]
    %v295 = vld [vmem:[#allocation8 + $0x50] sm:$0xff]
    %v296 = vld [vmem:[#allocation8 + $0x58] sm:$0xff]
    %v297 = vld [vmem:[#allocation8 + $0x60] sm:$0xff]
    %v298 = vld [vmem:[#allocation8 + $0x68] sm:$0xff]
    %v299 = vld [vmem:[#allocation8 + $0x70] sm:$0xff]
    %v300 = vld [vmem:[#allocation8 + $0x78] sm:$0xff]
    %v301 = vld [vmem:[%s8] sm:$0x1]
    %v303 = vperm.slane %v301, 0
    %305 = vmatpush.msra.mxu0 %v300
    %306 = vmatpush.msra.mxu0 %v299
    %307 = vmatpush.msra.mxu0 %v298
    %308 = vmatpush.msra.mxu0 %v297
    %309 = vmatpush.msra.mxu0 %v296
    %310 = vmatpush.msra.mxu0 %v295
    %311 = vmatpush.msra.mxu0 %v294
    %312 = vmatpush.msra.mxu0 %v293
    %313 = vmatpush.msra.mxu0 %v292
    %314 = vmatpush.msra.mxu0 %v291
    %315 = vmatpush.msra.mxu0 %v290
    %316 = vmatpush.msra.mxu0 %v289
    %317 = vmatpush.msra.mxu0 %v288
    %318 = vmatpush.msra.mxu0 %v287
    %319 = vmatpush.msra.mxu0 %v286
    %320 = vmatpush.msra.mxu0 %v285
    %321 = vmatmul.f32.gmra.mxu0 %v284
    %v322 = vpop.f32.mrf.mxu0
    %v323 = vadd.f32 %v303, %v322
    %324 = vdwg.mxu0
    %v325 = vmax.f32 %v323, 0.0
    %v326 = vld [vmem:[#allocation10] sm:$0xff]
    %v327 = vld [vmem:[#allocation10 + $0x8] sm:$0xff]
    %v328 = vld [vmem:[#allocation10 + $0x10] sm:$0xff]
    %v329 = vld [vmem:[#allocation10 + $0x18] sm:$0xff]
    %v330 = vld [vmem:[#allocation10 + $0x20] sm:$0xff]
    %v331 = vld [vmem:[#allocation10 + $0x28] sm:$0xff]
    %v332 = vld [vmem:[#allocation10 + $0x30] sm:$0xff]
    %v333 = vld [vmem:[#allocation10 + $0x38] sm:$0xff]
    %v334 = vld [vmem:[#allocation10 + $0x40] sm:$0xff]
    %v335 = vld [vmem:[#allocation10 + $0x48] sm:$0xff]
    %v336 = vld [vmem:[#allocation10 + $0x50] sm:$0xff]
    %v337 = vld [vmem:[#allocation10 + $0x58] sm:$0xff]
    %v338 = vld [vmem:[#allocation10 + $0x60] sm:$0xff]
    %v339 = vld [vmem:[#allocation10 + $0x68] sm:$0xff]
    %v340 = vld [vmem:[#allocation10 + $0x70] sm:$0xff]
    %v341 = vld [vmem:[#allocation10 + $0x78] sm:$0xff]
    %v342 = vld [vmem:[%s10] sm:$0x1]
    %v344 = vperm.slane %v342, 0
    %346 = vmatpush.msra.mxu0 %v341
    %347 = vmatpush.msra.mxu0 %v340
    %348 = vmatpush.msra.mxu0 %v339
    %349 = vmatpush.msra.mxu0 %v338
    %350 = vmatpush.msra.mxu0 %v337
    %351 = vmatpush.msra.mxu0 %v336
    %352 = vmatpush.msra.mxu0 %v335
    %353 = vmatpush.msra.mxu0 %v334
    %354 = vmatpush.msra.mxu0 %v333
    %355 = vmatpush.msra.mxu0 %v332
    %356 = vmatpush.msra.mxu0 %v331
    %357 = vmatpush.msra.mxu0 %v330
    %358 = vmatpush.msra.mxu0 %v329
    %359 = vmatpush.msra.mxu0 %v328
    %360 = vmatpush.msra.mxu0 %v327
    %361 = vmatpush.msra.mxu0 %v326
    %362 = vmatmul.f32.gmra.mxu0 %v325
    %v363 = vpop.f32.mrf.mxu0
    %v364 = vadd.f32 %v344, %v363
    %365 = vdwg.mxu0
    %v366 = vmax.f32 %v364, 0.0
    %v367 = vld [vmem:[%s11] sm:$0xff]
    %v368 = vld [vmem:[%s11 + $0x8] sm:$0xff]
    %v369 = vld [vmem:[%s11 + $0x10] sm:$0xff]
    %v370 = vld [vmem:[%s11 + $0x18] sm:$0xff]
    %v371 = vld [vmem:[%s11 + $0x20] sm:$0xff]
    %v372 = vld [vmem:[%s11 + $0x28] sm:$0xff]
    %v373 = vld [vmem:[%s11 + $0x30] sm:$0xff]
    %v374 = vld [vmem:[%s11 + $0x38] sm:$0xff]
    %v375 = vld [vmem:[%s11 + $0x40] sm:$0xff]
    %v376 = vld [vmem:[%s11 + $0x48] sm:$0xff]
    %v377 = vld [vmem:[%s11 + $0x50] sm:$0xff]
    %v378 = vld [vmem:[%s11 + $0x58] sm:$0xff]
    %v379 = vld [vmem:[%s11 + $0x60] sm:$0xff]
    %v380 = vld [vmem:[%s11 + $0x68] sm:$0xff]
    %v381 = vld [vmem:[%s11 + $0x70] sm:$0xff]
    %v382 = vld [vmem:[%s11 + $0x78] sm:$0xff]
    %v383 = vld [vmem:[%s12] sm:$0x1]
    %v385 = vperm.slane %v383, 0
    %387 = vmatpush.msra.mxu0 %v382
    %388 = vmatpush.msra.mxu0 %v381
    %389 = vmatpush.msra.mxu0 %v380
    %390 = vmatpush.msra.mxu0 %v379
    %391 = vmatpush.msra.mxu0 %v378
    %392 = vmatpush.msra.mxu0 %v377
    %393 = vmatpush.msra.mxu0 %v376
    %394 = vmatpush.msra.mxu0 %v375
    %395 = vmatpush.msra.mxu0 %v374
    %396 = vmatpush.msra.mxu0 %v373
    %397 = vmatpush.msra.mxu0 %v372
    %398 = vmatpush.msra.mxu0 %v371
    %399 = vmatpush.msra.mxu0 %v370
    %400 = vmatpush.msra.mxu0 %v369
    %401 = vmatpush.msra.mxu0 %v368
    %402 = vmatpush.msra.mxu0 %v367
    %403 = vmatmul.f32.gmra.mxu0 %v366
    %v404 = vpop.f32.mrf.mxu0
    %v405 = vadd.f32 %v385, %v404
    %406 = vdwg.mxu0
    %408 = vrot.lane.b32.xlu0 %v323, 64
    %v409 = vpop.permute.xlu0 %408
    %412 = vrot.lane.b32.xlu0 %v364, 96
    %v413 = vpop.permute.xlu0 %412
    %416 = vrot.lane.b32.xlu0 %v366, 112
    %v417 = vpop.permute.xlu0 %416
    %vm419 = vcmask 523264
    %v420 = vsel %vm419, %v241, %v409
    %vm421 = vcmask 785408
    %v422 = vsel %vm421, %v420, %v413
    %vm423 = vcmask 916480
    %v424 = vsel %vm423, %v422, %v417
    %425 = vst [vmem:[#allocation11] sm:$0xff] %v200
    %426 = vst [vmem:[#allocation11 + $0x8] sm:$0xff] %v424
    %vm427 = vcmask 64512
    %428 = vst.msk [vmem:[#allocation12] sm:$0xff] %vm427, %v405
    // Predicated region
    $region74: #{tpu_custom_call.1} parent=1 // pred_check
      _
    $region75: #{tpu_custom_call.1} parent=1 // pred_check_branch
      %430 = sbr.rel (0) target = $region77
    $region76: #{tpu_custom_call.1} parent=1 // pred_region
      %432 = vsyncadd [#allocation4], 0
      %s434 = sshll.u32 [#allocation11], 4
      %s435 = int_to_ptr.vmem [resolvable:$true] %s434
      %s436 = sshll.u32 %s13, 4
      %s437 = int_to_ptr.hbm [resolvable:$true] %s436
      %439 = dma.vmem_to_hbm [thread:$0]  %s435, 256, %s437, [#allocation4]
    $region77: #{tpu_custom_call.1} parent=1 // pred_fallthru
      _
    // Predicated region
    $region78: #{tpu_custom_call.1} parent=1 // pred_check
      _
    $region79: #{tpu_custom_call.1} parent=1 // pred_check_branch
      %441 = sbr.rel (0) target = $region81
    $region80: #{tpu_custom_call.1} parent=1 // pred_region
      %443 = vsyncadd [#allocation13], 0
      %s445 = sshll.u32 [#allocation12], 4
      %s446 = int_to_ptr.vmem [resolvable:$true] %s445
      %s447 = sshll.u32 %s14, 4
      %s448 = int_to_ptr.hbm [resolvable:$true] %s447
      %450 = dma.vmem_to_hbm [thread:$0]  %s446, 128, %s448, [#allocation13]
    $region81: #{tpu_custom_call.1} parent=1 // pred_fallthru
      _
    // Predicated region
    $region82: #{tpu_custom_call.1} parent=1 // pred_check
      _
    $region83: #{tpu_custom_call.1} parent=1 // pred_check_branch
      %452 = sbr.rel (0) target = $region85
    $region84: #{tpu_custom_call.1} parent=1 // pred_region
      %454 = dma.done [#allocation4], 256
    $region85: #{tpu_custom_call.1} parent=1 // pred_fallthru
      _
    // Predicated region
    $region86: #{tpu_custom_call.1} parent=1 // pred_check
      _
    $region87: #{tpu_custom_call.1} parent=1 // pred_check_branch
      %456 = sbr.rel (0) target = $region89
    $region88: #{tpu_custom_call.1} parent=1 // pred_region
      %458 = dma.done [#allocation13], 128
    $region89: #{tpu_custom_call.1} parent=1 // pred_fallthru
      _
    %459 = vsyncpa [#allocation3], 1
    %460 = vsyncpa [#allocation6], 1
    %461 = vsyncpa [#allocation9], 1
    %462 = vsyncpa [#allocation4], 1
    %463 = vsyncpa [#allocation13], 1

</llo_original>
